<compile_context>
chip_gen: v6e
topology: v6e:2x2x1
jax: 0.10.0
libtpu: 0.0.40
codegen_flags: <defaults>
</compile_context>

<pallas_src>
import functools
import math

import jax
import jax.numpy as jnp
from jax import lax
from jax.experimental import pallas as pl
from jax.experimental.pallas import tpu as pltpu


def _dot_product_attention_kernel(q_ref, k_ref, v_ref, vl_ref, out_ref, *, scale):
    # q_ref : (TB, Q, Dp)   k_ref : (TB, K, Dp)   v_ref : (TB, K, Dvp)
    # vl_ref: (TB, Q, 1) int32                    out_ref: (TB, Q, Dvp)
    # scores = Q @ K^T / sqrt(d)  -> (TB, Q, K); K lands on the lane axis.
    # Operands stay in the input dtype; accumulation is f32.
    scores = jnp.einsum("bqd,bkd->bqk", q_ref[...], k_ref[...],
                        preferred_element_type=jnp.float32) * scale

    # Masked softmax over keys.  -1e6 mask value matches the d2l reference.
    # Iota built once at (1,1,K); the compare broadcasts it, and the mask is
    # fused into one jnp.where so a single (TB,Q,K) slab stays live.
    col = lax.broadcasted_iota(jnp.int32, (1, 1, scores.shape[-1]), 2)
    scores = jnp.where(col >= vl_ref[...], jnp.float32(-1000000.0), scores)
    m = jnp.max(scores, axis=-1, keepdims=True)
    e = jnp.exp(scores - m)
    denom = jnp.sum(e, axis=-1, keepdims=True)
    # approx reciprocal uses the EUP slot; ~2^-12 relative error on the softmax
    # normalization, well within attention tolerances.
    attn = (e * pl.reciprocal(denom, approx=True)).astype(v_ref.dtype)

    # TODO(synk): dropout on attn skipped (identity in eval mode).
    out = jnp.einsum("bqk,bkd->bqd", attn, v_ref[...],
                     preferred_element_type=jnp.float32)
    out_ref[...] = out.astype(out_ref.dtype)


def _round_up(x, m):
    return (x + m - 1) // m * m


def _vmem_estimate(tb, Q, K, Dp, Dvp, in_itemsize, out_itemsize):
    # Double-buffered input/output streams + f32 softmax temporaries.
    streams = 2 * tb * (Q * Dp * in_itemsize      # q
                        + K * Dp * in_itemsize    # k
                        + K * Dvp * in_itemsize   # v
                        + Q * 4                   # valid_lens
                        + Q * Dvp * out_itemsize) # out
    temps = 3 * tb * Q * K * 4                    # scores / exp / attn slabs
    return streams + temps


def _choose_block_b(B, Q, K, Dp, Dvp, in_itemsize, out_itemsize,
                    budget_bytes=24 * 1024 * 1024, cap=512):
    """Largest power-of-two batch tile whose VMEM estimate fits the budget."""
    tb = 1
    cap = max(1, min(B, cap))
    while (tb * 2 <= cap and
           _vmem_estimate(tb * 2, Q, K, Dp, Dvp, in_itemsize, out_itemsize)
           <= budget_bytes):
        tb *= 2
    return tb


def dot_product_attention(queries, keys, values, valid_lens=None):
    """queries (B,Q,D), keys (B,K,D), values (B,K,Dv),
    valid_lens None | (B,) | (B,Q) int. Returns (B,Q,Dv) in the input dtype."""
    B, Q, D = queries.shape
    _, K, Dk = keys.shape
    _, _, Dv = values.shape
    assert Dk == D, "query feature dim must match key feature dim"

    out_dtype = jnp.result_type(queries.dtype, keys.dtype, values.dtype)
    in_itemsize = max(jnp.dtype(queries.dtype).itemsize,
                      jnp.dtype(values.dtype).itemsize)
    out_itemsize = jnp.dtype(out_dtype).itemsize

    # valid_lens -> (B, Q, 1) int32 (handles None, 1-D and 2-D uniformly).
    if valid_lens is None:
        vl = jnp.full((B, Q, 1), K, dtype=jnp.int32)
    else:
        valid_lens = valid_lens.astype(jnp.int32)
        if valid_lens.ndim == 1:
            vl = jnp.broadcast_to(valid_lens[:, None, None], (B, Q, 1))
        else:
            vl = valid_lens.reshape(B, Q, 1)

    # Lane-dense feature axes: zero-pad D and Dv up to multiples of 128 so the
    # output store and q/k/v loads are unmasked full-lane vectors.
    Dp = _round_up(D, 128)
    Dvp = _round_up(Dv, 128)
    if Dp != D:
        queries = jnp.pad(queries, ((0, 0), (0, 0), (0, Dp - D)))
        keys = jnp.pad(keys, ((0, 0), (0, 0), (0, Dp - D)))
    if Dvp != Dv:
        values = jnp.pad(values, ((0, 0), (0, 0), (0, Dvp - Dv)))

    # Batch tile sized against a conservative VMEM budget; keep >=2 grid steps
    # when possible so v7x's two TensorCores both get work.
    tb = _choose_block_b(B, Q, K, Dp, Dvp, in_itemsize, out_itemsize)
    if B >= 2 and B // tb < 2:
        tb = max(1, B // 2)
    b_pad = pl.cdiv(B, tb) * tb
    if b_pad != B:
        pad = b_pad - B
        queries = jnp.pad(queries, ((0, pad), (0, 0), (0, 0)))
        keys = jnp.pad(keys, ((0, pad), (0, 0), (0, 0)))
        values = jnp.pad(values, ((0, pad), (0, 0), (0, 0)))
        vl = jnp.pad(vl, ((0, pad), (0, 0), (0, 0)), constant_values=K)

    est_bytes = _vmem_estimate(tb, Q, K, Dp, Dvp, in_itemsize, out_itemsize)
    vmem_limit = int(min(64 * 1024 * 1024,
                         max(32 * 1024 * 1024, 2 * est_bytes)))

    kernel = functools.partial(_dot_product_attention_kernel,
                               scale=1.0 / math.sqrt(D))

    out = pl.pallas_call(
        kernel,
        out_shape=jax.ShapeDtypeStruct((b_pad, Q, Dvp), out_dtype),
        grid=(b_pad // tb,),
        in_specs=[
            pl.BlockSpec((tb, Q, Dp), lambda b: (b, 0, 0)),
            pl.BlockSpec((tb, K, Dp), lambda b: (b, 0, 0)),
            pl.BlockSpec((tb, K, Dvp), lambda b: (b, 0, 0)),
            pl.BlockSpec((tb, Q, 1), lambda b: (b, 0, 0)),
        ],
        out_specs=pl.BlockSpec((tb, Q, Dvp), lambda b: (b, 0, 0)),
        compiler_params=pltpu.CompilerParams(
            dimension_semantics=("parallel",),
            vmem_limit_bytes=vmem_limit),
    )(queries, keys, values, vl)

    return out[:B, :, :Dv]


def _reference(queries, keys, values, valid_lens):
    d = queries.shape[-1]
    scores = jnp.einsum("bqd,bkd->bqk", queries, keys) / math.sqrt(d)
    if valid_lens is not None:
        col = jnp.arange(scores.shape[-1])[None, None, :]
        mask = col >= valid_lens[:, None, None]
        scores = jnp.where(mask, -1000000.0, scores)
    attn = jax.nn.softmax(scores, axis=-1)
    return jnp.einsum("bqk,bkd->bqd", attn, values)


if __name__ == "__main__":
    # Shapes consistent with the PyTorch driver (with query dim == key dim, as
    # dot-product attention requires): B=2, Q=1, K=10, d=2, Dv=4.
    B, Q, K = 2, 1, 10
    d, Dv = 2, 4

    root = jax.random.PRNGKey(0)
    queries = jax.random.normal(root, (B, Q, d), dtype=jnp.float32)
    keys_in = jnp.ones((B, K, d), dtype=jnp.float32)
    values = jnp.tile(
        jnp.arange(K * Dv, dtype=jnp.float32).reshape(1, K, Dv), (B, 1, 1))
    valid_lens = jnp.array([2, 6], dtype=jnp.int32)

    out = dot_product_attention(queries, keys_in, values, valid_lens)
    out = jax.block_until_ready(out)

    ref = _reference(queries, keys_in, values, valid_lens)
    assert out.shape == (B, Q, Dv)
    assert jnp.allclose(out, ref, atol=1e-2, rtol=1e-3), (out, ref)

    print("KERNEL_OK")
</pallas_src>

<mosaic_0001>
module attributes {stable_mosaic.version = 11 : i64} {
  func.func @_dot_product_attention_kernel(%arg0: i32, %arg1: memref<1x1x128xf32, #tpu.memory_space<vmem>>, %arg2: memref<1x10x128xf32, #tpu.memory_space<vmem>>, %arg3: memref<1x10x128xf32, #tpu.memory_space<vmem>>, %arg4: memref<1x1x1xi32, #tpu.memory_space<vmem>>, %arg5: memref<1x1x128xf32, #tpu.memory_space<vmem>>) attributes {dimension_semantics = [#tpu.dimension_semantics<parallel>], iteration_bounds = array<i64: 2>, scalar_prefetch = 0 : i64, scratch_operands = 0 : i64, tpu.core_type = #tpu.core_type<tc>, window_params = [{transform_indices = @transform_0, window_bounds = array<i64: 1, 1, 128>}, {transform_indices = @transform_1, window_bounds = array<i64: 1, 10, 128>}, {transform_indices = @transform_2, window_bounds = array<i64: 1, 10, 128>}, {transform_indices = @transform_3, window_bounds = array<i64: 1, 1, 1>}, {transform_indices = @transform_4, window_bounds = array<i64: 1, 1, 128>}]} {
    %c0 = arith.constant 0 : index
    %c0_0 = arith.constant 0 : index
    %c0_1 = arith.constant 0 : index
    %0 = vector.load %arg1[%c0, %c0_0, %c0_1] : memref<1x1x128xf32, #tpu.memory_space<vmem>>, vector<1x1x128xf32>
    %c0_2 = arith.constant 0 : index
    %c0_3 = arith.constant 0 : index
    %c0_4 = arith.constant 0 : index
    %1 = vector.load %arg2[%c0_2, %c0_3, %c0_4] : memref<1x10x128xf32, #tpu.memory_space<vmem>>, vector<1x10x128xf32>
    "tpu.trace_start"() <{level = 10 : i32, message = "bqd,bkd->bqk"}> : () -> ()
    %cst = arith.constant dense<0.000000e+00> : vector<1x1x10xf32>
    %2 = tpu.matmul %0, %1, %cst {dimension_numbers = #tpu.dot_dimension_numbers<[2], [2], [1], [1], [0, 0, 0, 1, 1, 1], [0], [0]>} : vector<1x1x128xf32>, vector<1x10x128xf32>, vector<1x1x10xf32> -> vector<1x1x10xf32>
    "tpu.trace_stop"() : () -> ()
    %cst_5 = arith.constant 0.707106769 : f32
    %3 = vector.broadcast %cst_5 : f32 to vector<1x1x10xf32>
    %4 = arith.mulf %2, %3 : vector<1x1x10xf32>
    %5 = tpu.iota {dimensions = array<i32: 2>} : vector<1x1x10xi32>
    %c0_6 = arith.constant 0 : index
    %c0_7 = arith.constant 0 : index
    %c0_8 = arith.constant 0 : index
    %6 = vector.load %arg4[%c0_6, %c0_7, %c0_8] : memref<1x1x1xi32, #tpu.memory_space<vmem>>, vector<1x1x1xi32>
    %7 = vector.broadcast %6 : vector<1x1x1xi32> to vector<1x1x10xi32>
    %8 = arith.cmpi sge, %5, %7 : vector<1x1x10xi32>
    %cst_9 = arith.constant -1.000000e+06 : f32
    %9 = vector.broadcast %cst_9 : f32 to vector<1x1x10xf32>
    %10 = arith.select %8, %9, %4 : vector<1x1x10xi1>, vector<1x1x10xf32>
    %cst_10 = arith.constant dense<0xFF800000> : vector<1x1xf32>
    %11 = vector.multi_reduction <maximumf>, %10, %cst_10 [2] : vector<1x1x10xf32> to vector<1x1xf32>
    %12 = vector.shape_cast %11 : vector<1x1xf32> to vector<1x1x1xf32>
    %13 = vector.broadcast %12 : vector<1x1x1xf32> to vector<1x1x10xf32>
    %14 = arith.subf %10, %13 : vector<1x1x10xf32>
    %15 = math.exp %14 : vector<1x1x10xf32>
    %cst_11 = arith.constant dense<0.000000e+00> : vector<1x1xf32>
    %16 = vector.multi_reduction <add>, %15, %cst_11 [2] : vector<1x1x10xf32> to vector<1x1xf32>
    %17 = vector.shape_cast %16 : vector<1x1xf32> to vector<1x1x1xf32>
    %18 = tpu.reciprocal %17 {approx = true} : vector<1x1x1xf32> -> vector<1x1x1xf32>
    %19 = vector.broadcast %18 : vector<1x1x1xf32> to vector<1x1x10xf32>
    %20 = arith.mulf %15, %19 : vector<1x1x10xf32>
    %c0_12 = arith.constant 0 : index
    %c0_13 = arith.constant 0 : index
    %c0_14 = arith.constant 0 : index
    %21 = vector.load %arg3[%c0_12, %c0_13, %c0_14] : memref<1x10x128xf32, #tpu.memory_space<vmem>>, vector<1x10x128xf32>
    "tpu.trace_start"() <{level = 10 : i32, message = "bqk,bkd->bqd"}> : () -> ()
    %cst_15 = arith.constant dense<0.000000e+00> : vector<1x1x128xf32>
    %22 = tpu.matmul %20, %21, %cst_15 {dimension_numbers = #tpu.dot_dimension_numbers<[2], [1], [1], [2], [0, 0, 0, 1, 1, 2], [0], [0]>} : vector<1x1x10xf32>, vector<1x10x128xf32>, vector<1x1x128xf32> -> vector<1x1x128xf32>
    "tpu.trace_stop"() : () -> ()
    %c0_16 = arith.constant 0 : index
    %c0_17 = arith.constant 0 : index
    %c0_18 = arith.constant 0 : index
    %23 = vector.load %arg5[%c0_16, %c0_17, %c0_18] : memref<1x1x128xf32, #tpu.memory_space<vmem>>, vector<1x1x128xf32>
    tpu.vector_store %arg5[%c0_16, %c0_17, %c0_18], %22 {strides = array<i32>} : memref<1x1x128xf32, #tpu.memory_space<vmem>>, vector<1x1x128xf32>,
    return
  }
  func.func @transform_0(%arg0: i32) -> (i32, i32, i32) {
    %c0_i32 = arith.constant 0 : i32
    %c0_i32_0 = arith.constant 0 : i32
    %c0_i32_1 = arith.constant 0 : i32
    return %arg0, %c0_i32, %c0_i32_0 : i32, i32, i32
  }
  func.func @transform_1(%arg0: i32) -> (i32, i32, i32) {
    %c0_i32 = arith.constant 0 : i32
    %c0_i32_0 = arith.constant 0 : i32
    %c0_i32_1 = arith.constant 0 : i32
    return %arg0, %c0_i32, %c0_i32_0 : i32, i32, i32
  }
  func.func @transform_2(%arg0: i32) -> (i32, i32, i32) {
    %c0_i32 = arith.constant 0 : i32
    %c0_i32_0 = arith.constant 0 : i32
    %c0_i32_1 = arith.constant 0 : i32
    return %arg0, %c0_i32, %c0_i32_0 : i32, i32, i32
  }
  func.func @transform_3(%arg0: i32) -> (i32, i32, i32) {
    %c0_i32 = arith.constant 0 : i32
    %c0_i32_0 = arith.constant 0 : i32
    %c0_i32_1 = arith.constant 0 : i32
    return %arg0, %c0_i32, %c0_i32_0 : i32, i32, i32
  }
  func.func @transform_4(%arg0: i32) -> (i32, i32, i32) {
    %c0_i32 = arith.constant 0 : i32
    %c0_i32_0 = arith.constant 0 : i32
    %c0_i32_1 = arith.constant 0 : i32
    return %arg0, %c0_i32, %c0_i32_0 : i32, i32, i32
  }
}

</mosaic_0001>

<llo_original>
// kernel: tpu_custom_call.1
$region0: #{tpu_custom_call.1}
  #allocation0 [shape = 'u32[]', space=smem, size = 0x4, offset = 0x4, fixed_abs, tag = 'smem constant byte address 0x4 - core index']
  #allocation1 [shape = 'u32[144,128]{1,0:T(1,128)}', space=vmem, size = 0x12000, scoped, tag = 'internal scratch']
  %s0 = inlined_call_operand.vmem [shape: f32[2,1,128], index: 0, kind: input, shape index: {}]
  %s1 = inlined_call_operand.vmem [shape: f32[2,10,128], index: 1, kind: input, shape index: {}]
  %s2 = inlined_call_operand.vmem [shape: f32[2,10,128], index: 2, kind: input, shape index: {}]
  %s3 = inlined_call_operand.vmem [shape: s32[2,1,1], index: 3, kind: input, shape index: {}]
  %s4 = inlined_call_operand.hbm [shape: f32[2,1,128], index: 4, kind: output, shape index: {}]
  %s5 = sld [smem:[#allocation0]]
  $region49: #{tpu_custom_call.1} parent=0
    _
  %s7 = ssub.s32 1, %s5
  %s8 = scalar_select 0, %s7, %s5
  $region1: #{tpu_custom_call.1} parent=0
    #allocation2 [shape = 'u8[1024]{0}', space=vmem, size = 0x400, scoped, tag = 'output window, operand 0']
    #allocation3 [shape = 's32[2]{0}', space=sflag, size = 0x8, scoped, tag = 'scoped memory for tpu_custom_call.1']
    %9 = vsyncpa [#allocation3], 0
    %s10 = scalar_lea.sflag [#allocation3], 1
    %11 = vsyncpa %s10, 0
    loop: start=0, step=1, limit=4
    $region2: #{tpu_custom_call.1} parent=1 // loop_pre_header
      _
    $region3: #{tpu_custom_call.1} parent=1 // loop_header
      %s13 = sphi 0, %s17
      %p14 = scmp.ge.s32.totalorder %s13, 4
      %s23 = sphi 0, %s25
      %s26 = sphi 0, %s23
      %s27 = sphi 0, %s26
      %s43 = sphi 0, %s27
      %s49 = sphi 0, %s51
      %s52 = sphi 0, %s49
      %s53 = sphi 0, %s52
      %s69 = sphi 0, %s53
      %s75 = sphi 0, %s77
      %s78 = sphi 0, %s75
      %s79 = sphi 0, %s78
      %s95 = sphi 0, %s79
      %s101 = sphi 0, %s103
      %s104 = sphi 0, %s101
      %s105 = sphi 0, %s104
      %s121 = sphi 0, %s105
      %s127 = sphi 0, %s129
      %s130 = sphi 0, %s127
      %s131 = sphi 0, %s130
      %s147 = sphi 0, %s131
    $region4: #{tpu_custom_call.1} parent=1 // loop_header_branch
      %16 = sbr.rel (%p14) target = $region8
    $region5: #{tpu_custom_call.1} parent=1 // loop_body
      %s18 = ssub.s32 %s13, 1
      %s19 = ssub.s32 %s13, 2
      %s20 = sadd.s32 %s13, 1
      %s21 = ssub.s32 %s13, %s20
      %p22 = scmp.eq.s32.totalorder %s21, 0
      %s24 = sadd.s32 %s23, 1
      %s25 = scalar_select %p22, %s23, %s24
      %p28 = pneg %p22
      %p29 = scmp.eq.s32.totalorder %s13, 1
      %p30 = por %p28, %p29
      %p31 = scmp.ne.s32.totalorder %s23, %s26
      %p32 = scmp.eq.s32.totalorder %s13, 0
      %p33 = por %p31, %p32
      %p34 = scmp.ne.s32.totalorder %s23, %s26
      %p35 = scmp.eq.s32.totalorder %s18, 1
      %p36 = por %p34, %p35
      %p37 = scmp.ne.s32.totalorder %s26, %s27
      %p38 = scmp.eq.s32.totalorder %s18, 0
      %p39 = por %p37, %p38
      %p40 = scmp.ne.s32.totalorder %s26, %s27
      %p41 = scmp.eq.s32.totalorder %s19, 1
      %p42 = por %p40, %p41
      %p44 = scmp.ne.s32.totalorder %s27, %s43
      %p45 = scmp.eq.s32.totalorder %s19, 0
      %p46 = por %p44, %p45
      %s47 = ssub.s32 %s13, %s20
      %p48 = scmp.eq.s32.totalorder %s47, 0
      %s50 = sadd.s32 %s49, 1
      %s51 = scalar_select %p48, %s49, %s50
      %p54 = pneg %p48
      %p55 = scmp.eq.s32.totalorder %s13, 1
      %p56 = por %p54, %p55
      %p57 = scmp.ne.s32.totalorder %s49, %s52
      %p58 = scmp.eq.s32.totalorder %s13, 0
      %p59 = por %p57, %p58
      %p60 = scmp.ne.s32.totalorder %s49, %s52
      %p61 = scmp.eq.s32.totalorder %s18, 1
      %p62 = por %p60, %p61
      %p63 = scmp.ne.s32.totalorder %s52, %s53
      %p64 = scmp.eq.s32.totalorder %s18, 0
      %p65 = por %p63, %p64
      %p66 = scmp.ne.s32.totalorder %s52, %s53
      %p67 = scmp.eq.s32.totalorder %s19, 1
      %p68 = por %p66, %p67
      %p70 = scmp.ne.s32.totalorder %s53, %s69
      %p71 = scmp.eq.s32.totalorder %s19, 0
      %p72 = por %p70, %p71
      %s73 = ssub.s32 %s13, %s20
      %p74 = scmp.eq.s32.totalorder %s73, 0
      %s76 = sadd.s32 %s75, 1
      %s77 = scalar_select %p74, %s75, %s76
      %p80 = pneg %p74
      %p81 = scmp.eq.s32.totalorder %s13, 1
      %p82 = por %p80, %p81
      %p83 = scmp.ne.s32.totalorder %s75, %s78
      %p84 = scmp.eq.s32.totalorder %s13, 0
      %p85 = por %p83, %p84
      %p86 = scmp.ne.s32.totalorder %s75, %s78
      %p87 = scmp.eq.s32.totalorder %s18, 1
      %p88 = por %p86, %p87
      %p89 = scmp.ne.s32.totalorder %s78, %s79
      %p90 = scmp.eq.s32.totalorder %s18, 0
      %p91 = por %p89, %p90
      %p92 = scmp.ne.s32.totalorder %s78, %s79
      %p93 = scmp.eq.s32.totalorder %s19, 1
      %p94 = por %p92, %p93
      %p96 = scmp.ne.s32.totalorder %s79, %s95
      %p97 = scmp.eq.s32.totalorder %s19, 0
      %p98 = por %p96, %p97
      %s99 = ssub.s32 %s13, %s20
      %p100 = scmp.eq.s32.totalorder %s99, 0
      %s102 = sadd.s32 %s101, 1
      %s103 = scalar_select %p100, %s101, %s102
      %p106 = pneg %p100
      %p107 = scmp.eq.s32.totalorder %s13, 1
      %p108 = por %p106, %p107
      %p109 = scmp.ne.s32.totalorder %s101, %s104
      %p110 = scmp.eq.s32.totalorder %s13, 0
      %p111 = por %p109, %p110
      %p112 = scmp.ne.s32.totalorder %s101, %s104
      %p113 = scmp.eq.s32.totalorder %s18, 1
      %p114 = por %p112, %p113
      %p115 = scmp.ne.s32.totalorder %s104, %s105
      %p116 = scmp.eq.s32.totalorder %s18, 0
      %p117 = por %p115, %p116
      %p118 = scmp.ne.s32.totalorder %s104, %s105
      %p119 = scmp.eq.s32.totalorder %s19, 1
      %p120 = por %p118, %p119
      %p122 = scmp.ne.s32.totalorder %s105, %s121
      %p123 = scmp.eq.s32.totalorder %s19, 0
      %p124 = por %p122, %p123
      %s125 = ssub.s32 %s13, %s20
      %p126 = scmp.eq.s32.totalorder %s125, 0
      %s128 = sadd.s32 %s127, 1
      %s129 = scalar_select %p126, %s127, %s128
      %p132 = pneg %p126
      %p133 = scmp.eq.s32.totalorder %s13, 1
      %p134 = por %p132, %p133
      %p135 = scmp.ne.s32.totalorder %s127, %s130
      %p136 = scmp.eq.s32.totalorder %s13, 0
      %p137 = por %p135, %p136
      %p138 = scmp.ne.s32.totalorder %s127, %s130
      %p139 = scmp.eq.s32.totalorder %s18, 1
      %p140 = por %p138, %p139
      %p141 = scmp.ne.s32.totalorder %s130, %s131
      %p142 = scmp.eq.s32.totalorder %s18, 0
      %p143 = por %p141, %p142
      %p144 = scmp.ne.s32.totalorder %s130, %s131
      %p145 = scmp.eq.s32.totalorder %s19, 1
      %p146 = por %p144, %p145
      %p148 = scmp.ne.s32.totalorder %s131, %s147
      %p149 = scmp.eq.s32.totalorder %s19, 0
      %p150 = por %p148, %p149
      %p151 = scmp.le.s32.totalorder 1, %s13
      %p152 = scmp.lt.s32.totalorder %s13, 3
      %p153 = pnand %p151, %p152
      %p154 = pneg %p153
      // Predicated region
      $region9: #{tpu_custom_call.1} parent=5 // pred_check
        _
      $region10: #{tpu_custom_call.1} parent=5 // pred_check_branch
        %156 = sbr.rel (%p153) target = $region12
      $region11: #{tpu_custom_call.1} parent=5 // pred_region
        %s157 = ssub.s32 %s13, 1
      $region12: #{tpu_custom_call.1} parent=5 // pred_fallthru
        _
      %p158 = scmp.lt.s32.totalorder %s13, 2
      // Predicated region
      $region13: #{tpu_custom_call.1} parent=5 // pred_check
        %p159 = pneg %p158
      $region14: #{tpu_custom_call.1} parent=5 // pred_check_branch
        %161 = sbr.rel (%p159) target = $region16
      $region15: #{tpu_custom_call.1} parent=5 // pred_region
        // Predicated region
        $region17: #{tpu_custom_call.1} parent=15 // pred_check
          %p162 = pneg %p33
        $region18: #{tpu_custom_call.1} parent=15 // pred_check_branch
          %164 = sbr.rel (%p162) target = $region20
        $region19: #{tpu_custom_call.1} parent=15 // pred_region
          %p165 = scmp.lt.s32.totalorder %s13, 1
          %s166 = scalar_select %p165, %s13, 1
          %s167 = scalar_lea.vmem %s0, %s166
        $region20: #{tpu_custom_call.1} parent=15 // pred_fallthru
          _
        // Predicated region
        $region21: #{tpu_custom_call.1} parent=15 // pred_check
          %p168 = pneg %p59
        $region22: #{tpu_custom_call.1} parent=15 // pred_check_branch
          %170 = sbr.rel (%p168) target = $region24
        $region23: #{tpu_custom_call.1} parent=15 // pred_region
          %p171 = scmp.lt.s32.totalorder %s13, 1
          %s172 = scalar_select %p171, %s13, 1
          %s173 = smul.addr %s172, 2
          %s174 = smul.addr %s173, 8
          %s175 = scalar_lea.vmem %s1, %s174
        $region24: #{tpu_custom_call.1} parent=15 // pred_fallthru
          _
        // Predicated region
        $region25: #{tpu_custom_call.1} parent=15 // pred_check
          %p176 = pneg %p85
        $region26: #{tpu_custom_call.1} parent=15 // pred_check_branch
          %178 = sbr.rel (%p176) target = $region28
        $region27: #{tpu_custom_call.1} parent=15 // pred_region
          %p179 = scmp.lt.s32.totalorder %s13, 1
          %s180 = scalar_select %p179, %s13, 1
          %s181 = smul.addr %s180, 2
          %s182 = smul.addr %s181, 8
          %s183 = scalar_lea.vmem %s2, %s182
        $region28: #{tpu_custom_call.1} parent=15 // pred_fallthru
          _
        // Predicated region
        $region29: #{tpu_custom_call.1} parent=15 // pred_check
          %p184 = pneg %p111
        $region30: #{tpu_custom_call.1} parent=15 // pred_check_branch
          %186 = sbr.rel (%p184) target = $region32
        $region31: #{tpu_custom_call.1} parent=15 // pred_region
          %p187 = scmp.lt.s32.totalorder %s13, 1
          %s188 = scalar_select %p187, %s13, 1
          %s189 = scalar_lea.vmem %s3, %s188
        $region32: #{tpu_custom_call.1} parent=15 // pred_fallthru
          _
      $region16: #{tpu_custom_call.1} parent=5 // pred_fallthru
        _
      %p190 = scmp.le.s32.totalorder 1, %s13
      %p191 = scmp.lt.s32.totalorder %s13, 3
      %p192 = pnand %p190, %p191
      %p193 = pneg %p192
      // Predicated region
      $region33: #{tpu_custom_call.1} parent=5 // pred_check
        _
      $region34: #{tpu_custom_call.1} parent=5 // pred_check_branch
        %195 = sbr.rel (%p192) target = $region36
      $region35: #{tpu_custom_call.1} parent=5 // pred_region
        %s196 = ssub.s32 %s13, 1
        %p197 = scmp.lt.s32.totalorder %s18, 1
        %s198 = scalar_select %p197, %s18, 1
        %s199 = scalar_lea.vmem %s0, %s198
        %p200 = pneg %p39
        %p201 = pneg %p36
        %p202 = scmp.lt.s32.totalorder %s18, 1
        %s203 = scalar_select %p202, %s18, 1
        %s204 = smul.addr %s203, 2
        %s205 = smul.addr %s204, 8
        %s206 = scalar_lea.vmem %s1, %s205
        %p207 = pneg %p65
        %p208 = pneg %p62
        %p209 = scmp.lt.s32.totalorder %s18, 1
        %s210 = scalar_select %p209, %s18, 1
        %s211 = smul.addr %s210, 2
        %s212 = smul.addr %s211, 8
        %s213 = scalar_lea.vmem %s2, %s212
        %p214 = pneg %p91
        %p215 = pneg %p88
        %p216 = scmp.lt.s32.totalorder %s18, 1
        %s217 = scalar_select %p216, %s18, 1
        %s218 = scalar_lea.vmem %s3, %s217
        %p219 = pneg %p117
        %p220 = pneg %p114
        %p221 = pneg %p143
        %p222 = pneg %p140
        %s223 = sand.u32 %s130, 1
        %s224 = scalar_lea.sflag [#allocation3], %s223
        %s225 = sand.u32 %s130, 1
        %s226 = scalar_lea.vmem [#allocation2], %s225
        %p227 = scmp.lt.s32.totalorder %s18, 1
        %s228 = scalar_select %p227, %s18, 1
        %s229 = scalar_lea.vmem %s0, %s228
        %p230 = scmp.lt.s32.totalorder %s18, 1
        %s231 = scalar_select %p230, %s18, 1
        %s232 = smul.addr %s231, 2
        %s233 = smul.addr %s232, 8
        %s234 = scalar_lea.vmem %s1, %s233
        %p235 = scmp.lt.s32.totalorder %s18, 1
        %s236 = scalar_select %p235, %s18, 1
        %s237 = smul.addr %s236, 2
        %s238 = smul.addr %s237, 8
        %s239 = scalar_lea.vmem %s2, %s238
        %p240 = scmp.lt.s32.totalorder %s18, 1
        %s241 = scalar_select %p240, %s18, 1
        %s242 = scalar_lea.vmem %s3, %s241
        %v243 = vld [vmem:[%s229] sm:$0x1]
        %v244 = vld [vmem:[%s234] sm:$0xff]
        %v245 = vld [vmem:[%s234 + $0x8] sm:$0x3]
        %246 = vmatprep.subr.mxu0 0.0
        %247 = vmatpush1.xpose.msra.mxu0 0.0
        %248 = vmatprep.subr.mxu0 0.0
        %249 = vmatpush1.xpose.msra.mxu0 0.0
        %250 = vmatprep.subr.mxu0 0.0
        %251 = vmatpush1.xpose.msra.mxu0 0.0
        %252 = vmatprep.subr.mxu0 0.0
        %253 = vmatpush1.xpose.msra.mxu0 0.0
        %254 = vmatprep.subr.mxu0 0.0
        %255 = vmatpush1.xpose.msra.mxu0 0.0
        %256 = vmatprep.subr.mxu0 0.0
        %257 = vmatpush1.xpose.msra.mxu0 0.0
        %258 = vmatprep.subr.mxu0 0.0
        %259 = vmatpush1.xpose.msra.mxu0 0.0
        %260 = vmatprep.subr.mxu0 0.0
        %261 = vmatpush1.xpose.msra.mxu0 0.0
        %262 = vmatprep.subr.mxu0 0.0
        %263 = vmatpush1.xpose.msra.mxu0 0.0
        %264 = vmatprep.subr.mxu0 0.0
        %265 = vmatpush1.xpose.msra.mxu0 0.0
        %266 = vmatprep.subr.mxu0 0.0
        %267 = vmatpush1.xpose.msra.mxu0 0.0
        %268 = vmatprep.subr.mxu0 0.0
        %269 = vmatpush1.xpose.msra.mxu0 0.0
        %270 = vmatprep.subr.mxu0 0.0
        %271 = vmatpush1.xpose.msra.mxu0 0.0
        %272 = vmatprep.subr.mxu0 0.0
        %273 = vmatpush1.xpose.msra.mxu0 0.0
        %274 = vmatprep.subr.mxu0 0.0
        %275 = vmatpush1.xpose.msra.mxu0 %v245
        %276 = vmatprep.subr.mxu0 0.0
        %277 = vmatpush1.xpose.msra.mxu0 %v244
        %278 = vmatprep.subr.mxu0 0.0
        %279 = vmatpush2.xpose.msra.mxu0 0.0
        %280 = vmatprep.subr.mxu0 0.0
        %281 = vmatpush2.xpose.msra.mxu0 0.0
        %282 = vmatprep.subr.mxu0 0.0
        %283 = vmatpush2.xpose.msra.mxu0 0.0
        %284 = vmatprep.subr.mxu0 0.0
        %285 = vmatpush2.xpose.msra.mxu0 0.0
        %286 = vmatprep.subr.mxu0 0.0
        %287 = vmatpush2.xpose.msra.mxu0 0.0
        %288 = vmatprep.subr.mxu0 0.0
        %289 = vmatpush2.xpose.msra.mxu0 0.0
        %290 = vmatprep.subr.mxu0 0.0
        %291 = vmatpush2.xpose.msra.mxu0 0.0
        %292 = vmatprep.subr.mxu0 0.0
        %293 = vmatpush2.xpose.msra.mxu0 0.0
        %294 = vmatprep.subr.mxu0 0.0
        %295 = vmatpush2.xpose.msra.mxu0 0.0
        %296 = vmatprep.subr.mxu0 0.0
        %297 = vmatpush2.xpose.msra.mxu0 0.0
        %298 = vmatprep.subr.mxu0 0.0
        %299 = vmatpush2.xpose.msra.mxu0 0.0
        %300 = vmatprep.subr.mxu0 0.0
        %301 = vmatpush2.xpose.msra.mxu0 0.0
        %302 = vmatprep.subr.mxu0 0.0
        %303 = vmatpush2.xpose.msra.mxu0 0.0
        %304 = vmatprep.subr.mxu0 0.0
        %305 = vmatpush2.xpose.msra.mxu0 0.0
        %306 = vmatprep.subr.mxu0 0.0
        %307 = vmatpush2.xpose.msra.mxu0 0.0
        %308 = vmatprep.subr.mxu0 0.0
        %309 = vmatpush2.xpose.msra.mxu0 0.0
        %310 = vmatprep.mubr.f32.mxu0 0.0
        %311 = vmatmul.mubr.f32.gmra.mxu0 %v243
        %v312 = vpop.f32.mrf.mxu0
        %v313 = vadd.f32 0.0, %v312
        %v314 = vpop.f32.mrf.mxu0
        %315 = vdwg.mxu0
        %v316 = vmul.f32 %v313, 0.70710677
        %v317 = vlaneseq
        %v318 = vand.u32 %v317, 127
        %v319 = vld [vmem:[%s242] sm:$0x1]
        %320 = vset.pattern.permute.xlu0 0
        %321 = vperm.xlu0 %320, %v319
        %v322 = vpop.permute.xlu0 %321
        %v323 = vlaneseq
        %v324 = vshrl.u32 %v323, 7
        %v325 = vsub.s32 0, %v324
        %v326 = vrot.slane %v322, %v325
        %vm327 = vcmp.ge.s32.totalorder %v318, %v326
        %v328 = vsel %vm327, -1000000.0, %v316
        %vm329 = vcmask 73728
        %v330 = vsel %vm329, %v328, -inf
        %331 = vmax.xlane.f32.xlu0 %v330
        %v332 = vpop.xlane.xlu0 %331
        %v333 = vsub.f32 %v328, %v332
        %v334 = vmul.f32 %v333, 1.442695
        %v335 = vpow.pop %v334
        %v336 = vsel %vm329, %v335, 0.0
        %337 = vadd.xlane.f32.xlu0 %v336
        %v338 = vpop.xlane.xlu0 %337
        %v339 = vrcp.pop %v338
        %v340 = vmul.f32 %v335, %v339
        %v341 = vld [vmem:[%s239] sm:$0xff]
        %v342 = vld [vmem:[%s239 + $0x8] sm:$0x3]
        %vm343 = vcmask 80896
        %v345 = vsel %vm343, %v340, 0
        %vm347 = vcmask 1041408
        %v349 = vsel %vm347, %v342, 0
        %351 = vmatprep.subr.mxu0 0.0
        %352 = vmatpush1.msra.mxu0 0.0
        %353 = vmatprep.subr.mxu0 0.0
        %354 = vmatpush1.msra.mxu0 0.0
        %355 = vmatprep.subr.mxu0 0.0
        %356 = vmatpush1.msra.mxu0 0.0
        %357 = vmatprep.subr.mxu0 0.0
        %358 = vmatpush1.msra.mxu0 0.0
        %359 = vmatprep.subr.mxu0 0.0
        %360 = vmatpush1.msra.mxu0 0.0
        %361 = vmatprep.subr.mxu0 0.0
        %362 = vmatpush1.msra.mxu0 0.0
        %363 = vmatprep.subr.mxu0 0.0
        %364 = vmatpush1.msra.mxu0 0.0
        %365 = vmatprep.subr.mxu0 0.0
        %366 = vmatpush1.msra.mxu0 0.0
        %367 = vmatprep.subr.mxu0 0.0
        %368 = vmatpush1.msra.mxu0 0.0
        %369 = vmatprep.subr.mxu0 0.0
        %370 = vmatpush1.msra.mxu0 0.0
        %371 = vmatprep.subr.mxu0 0.0
        %372 = vmatpush1.msra.mxu0 0.0
        %373 = vmatprep.subr.mxu0 0.0
        %374 = vmatpush1.msra.mxu0 0.0
        %375 = vmatprep.subr.mxu0 0.0
        %376 = vmatpush1.msra.mxu0 0.0
        %377 = vmatprep.subr.mxu0 0.0
        %378 = vmatpush1.msra.mxu0 0.0
        %379 = vmatprep.subr.mxu0 0.0
        %380 = vmatpush1.msra.mxu0 %v349
        %381 = vmatprep.subr.mxu0 0.0
        %382 = vmatpush1.msra.mxu0 %v341
        %383 = vmatprep.subr.mxu0 0.0
        %384 = vmatpush2.msra.mxu0 0.0
        %385 = vmatprep.subr.mxu0 0.0
        %386 = vmatpush2.msra.mxu0 0.0
        %387 = vmatprep.subr.mxu0 0.0
        %388 = vmatpush2.msra.mxu0 0.0
        %389 = vmatprep.subr.mxu0 0.0
        %390 = vmatpush2.msra.mxu0 0.0
        %391 = vmatprep.subr.mxu0 0.0
        %392 = vmatpush2.msra.mxu0 0.0
        %393 = vmatprep.subr.mxu0 0.0
        %394 = vmatpush2.msra.mxu0 0.0
        %395 = vmatprep.subr.mxu0 0.0
        %396 = vmatpush2.msra.mxu0 0.0
        %397 = vmatprep.subr.mxu0 0.0
        %398 = vmatpush2.msra.mxu0 0.0
        %399 = vmatprep.subr.mxu0 0.0
        %400 = vmatpush2.msra.mxu0 0.0
        %401 = vmatprep.subr.mxu0 0.0
        %402 = vmatpush2.msra.mxu0 0.0
        %403 = vmatprep.subr.mxu0 0.0
        %404 = vmatpush2.msra.mxu0 0.0
        %405 = vmatprep.subr.mxu0 0.0
        %406 = vmatpush2.msra.mxu0 0.0
        %407 = vmatprep.subr.mxu0 0.0
        %408 = vmatpush2.msra.mxu0 0.0
        %409 = vmatprep.subr.mxu0 0.0
        %410 = vmatpush2.msra.mxu0 0.0
        %411 = vmatprep.subr.mxu0 0.0
        %412 = vmatpush2.msra.mxu0 0.0
        %413 = vmatprep.subr.mxu0 0.0
        %414 = vmatpush2.msra.mxu0 0.0
        %415 = vmatprep.mubr.f32.mxu0 0.0
        %416 = vmatmul.mubr.f32.gmra.mxu0 %v345
        %v417 = vpop.f32.mrf.mxu0
        %v418 = vadd.f32 0.0, %v417
        %v419 = vpop.f32.mrf.mxu0
        %420 = vdwg.mxu0
        %421 = vst [vmem:[%s226] sm:$0x1] %v418
        %s422 = sand.u32 %s130, 1
        %s423 = scalar_lea.sflag [#allocation3], %s422
        %s424 = sand.u32 %s130, 1
        %s425 = scalar_lea.vmem [#allocation2], %s424
        // Predicated region
        $region37: #{tpu_custom_call.1} parent=35 // pred_check
          %p426 = pneg %p140
        $region38: #{tpu_custom_call.1} parent=35 // pred_check_branch
          %428 = sbr.rel (%p426) target = $region40
        $region39: #{tpu_custom_call.1} parent=35 // pred_region
          %s430 = ssub.s32 16, 16
          %431 = vsyncadd %s423, %s430
          %s432 = smul.addr %s18, 16
          %s433 = scalar_lea.hbm %s4, %s432
          %s435 = sshll.u32 %s425, 4
          %s436 = int_to_ptr.vmem [resolvable:$true] %s435
          %438 = dma.vmem_to_hbm [thread:$0]  %s436, 16, %s433, %s423
        $region40: #{tpu_custom_call.1} parent=35 // pred_fallthru
          _
      $region36: #{tpu_custom_call.1} parent=5 // pred_fallthru
        _
      %p439 = scmp.le.s32.totalorder 2, %s13
      // Predicated region
      $region41: #{tpu_custom_call.1} parent=5 // pred_check
        %p440 = pneg %p439
      $region42: #{tpu_custom_call.1} parent=5 // pred_check_branch
        %442 = sbr.rel (%p440) target = $region44
      $region43: #{tpu_custom_call.1} parent=5 // pred_region
        %s443 = ssub.s32 %s13, 2
        // Predicated region
        $region45: #{tpu_custom_call.1} parent=43 // pred_check
          %p444 = pneg %p146
        $region46: #{tpu_custom_call.1} parent=43 // pred_check_branch
          %446 = sbr.rel (%p444) target = $region48
        $region47: #{tpu_custom_call.1} parent=43 // pred_region
          %s447 = sand.u32 %s131, 1
          %s448 = scalar_lea.sflag [#allocation3], %s447
          %s449 = sand.u32 %s131, 1
          %s450 = scalar_lea.vmem [#allocation2], %s449
          %451 = dma.done %s448, 16
        $region48: #{tpu_custom_call.1} parent=43 // pred_fallthru
          _
      $region44: #{tpu_custom_call.1} parent=5 // pred_fallthru
        _
    $region6: #{tpu_custom_call.1} parent=1 // loop_footer
      %s17 = sadd.s32 1, %s13
    $region7: #{tpu_custom_call.1} parent=1 // loop_footer_branch
      %12 = sbr.rel target = $region3
    $region8: #{tpu_custom_call.1} parent=1 // loop_exit
      _
    %452 = vsyncpa [#allocation3], 1
    %s453 = scalar_lea.sflag [#allocation3], 1
    %454 = vsyncpa %s453, 1

</llo_original>
